<compile_context>
chip_gen: v5e
topology: v5e:2x2
jax: 0.10.0
libtpu: 0.0.40
codegen_flags: <defaults>
</compile_context>

<pallas_src>
import functools
import math

import jax
import jax.numpy as jnp
from jax import lax
from jax.experimental import pallas as pl
from jax.experimental.pallas import tpu as pltpu


# ----------------------------- helpers -----------------------------

_VMEM_LIMIT = 64 * 1024 * 1024
_ROW_TILE_CAP = 256


def _mosaic_params(ndim):
    return pltpu.CompilerParams(
        dimension_semantics=("parallel",) * ndim,
        vmem_limit_bytes=_VMEM_LIMIT)


def _row_tiling(m, cap=_ROW_TILE_CAP):
    """Fixed row tile (multiple of 8, <= cap) + padded row count."""
    tile = cap if m >= cap else max(8, -(-m // 8) * 8)
    mp = -(-m // tile) * tile
    return tile, mp


def _pad_rows(x, mp):
    m = x.shape[-2]
    if mp == m:
        return x
    pad = [(0, 0)] * x.ndim
    pad[-2] = (0, mp - m)
    return jnp.pad(x, pad)


def _ln(x, g, b):
    mean = jnp.mean(x, axis=-1, keepdims=True)
    var = jnp.mean((x - mean) ** 2, axis=-1, keepdims=True)
    return (x - mean) * lax.rsqrt(var + 1e-5) * g + b


# ----------------------------- Pallas kernels -----------------------------

def _value_proj_kernel(x_ref, w_ref, b_ref, o_ref):
    y = jnp.dot(x_ref[...].astype(jnp.bfloat16), w_ref[...],
                preferred_element_type=jnp.float32) + b_ref[...]
    o_ref[...] = y.astype(o_ref.dtype)          # bf16 writeback


def _self_attn_kernel(tgt_ref, pos_ref, wqkv_ref, bqkv_ref, wo_ref, bo_ref,
                      g_ref, b_ref, o_ref, *, num_heads, scale):
    tgt = tgt_ref[...]                           # [Q, D] f32 (residual stream)
    pos = pos_ref[...]
    Q, D = tgt.shape
    Dh = D // num_heads
    # one wide QKV matmul: rows [tgt+pos ; tgt], cols [wq | wk | wv]
    x2 = jnp.concatenate([tgt + pos, tgt], axis=0).astype(jnp.bfloat16)   # [2Q, D]
    y = jnp.dot(x2, wqkv_ref[...], preferred_element_type=jnp.float32) + bqkv_ref[...]
    q = y[:Q, :D]
    k = y[:Q, D:2 * D]
    v = y[Q:, 2 * D:]
    wo = wo_ref[...]                             # [D, D] bf16
    acc = jnp.zeros((Q, D), jnp.float32)
    for h in range(num_heads):                   # out-proj accumulated per head (no lane concat)
        qh = q[:, h * Dh:(h + 1) * Dh].astype(jnp.bfloat16)
        kh = k[:, h * Dh:(h + 1) * Dh].astype(jnp.bfloat16)
        vh = v[:, h * Dh:(h + 1) * Dh].astype(jnp.bfloat16)
        s = lax.dot_general(qh, kh, (((1,), (1,)), ((), ())),
                            preferred_element_type=jnp.float32) * scale
        s = s - jnp.max(s, axis=-1, keepdims=True)
        p = jnp.exp(s)
        p = p * pl.reciprocal(jnp.sum(p, axis=-1, keepdims=True), approx=True)
        pv = jnp.dot(p.astype(jnp.bfloat16), vh, preferred_element_type=jnp.float32)
        acc = acc + jnp.dot(pv.astype(jnp.bfloat16), wo[h * Dh:(h + 1) * Dh, :],
                            preferred_element_type=jnp.float32)
    out = acc + bo_ref[...]
    o_ref[...] = _ln(tgt + out, g_ref[...], b_ref[...])   # residual + LayerNorm2


def _samp_proj_kernel(tgt_ref, pos_ref, w_ref, b_ref, o_ref, *, num_heads, n_lp, off_dim):
    x = (tgt_ref[...] + pos_ref[...]).astype(jnp.bfloat16)
    y = jnp.dot(x, w_ref[...], preferred_element_type=jnp.float32) + b_ref[...]
    off = y[:, :off_dim]
    aw = y[:, off_dim:]                              # [tm, H*L*P]
    aw_dim = num_heads * n_lp
    # per-head softmax over L*P using ONE dense row-max (valid: constant per segment)
    # and block-ones matmuls for the per-head sums / broadcast-back (no 8-lane reductions).
    m = jnp.max(aw, axis=-1, keepdims=True)
    e = jnp.exp(aw - m)
    blk = (lax.broadcasted_iota(jnp.int32, (aw_dim, num_heads), 0) // n_lp
           == lax.broadcasted_iota(jnp.int32, (aw_dim, num_heads), 1)
           ).astype(jnp.float32)                     # [aw_dim, H]
    blk_t = (lax.broadcasted_iota(jnp.int32, (num_heads, aw_dim), 0)
             == lax.broadcasted_iota(jnp.int32, (num_heads, aw_dim), 1) // n_lp
             ).astype(jnp.float32)                   # [H, aw_dim]
    s = jnp.dot(e, blk, preferred_element_type=jnp.float32)            # [tm, H]
    inv = pl.reciprocal(s, approx=True)
    denom = jnp.dot(inv, blk_t, preferred_element_type=jnp.float32)    # [tm, aw_dim]
    p = e * denom
    o_ref[...] = jnp.concatenate([off, p], axis=-1)  # single lane-dense output slab


def _deform_out_kernel(vals_ref, tgt_ref, wdef_ref, bo_ref, g_ref, b_ref, feat_ref, o_ref):
    # vals: [tm, H*L*P*Dh] bf16, already multiplied by attention weights.
    # W_def folds the (L*P) reduction and the out-projection into one MXU matmul.
    out = jnp.dot(vals_ref[...], wdef_ref[...],
                  preferred_element_type=jnp.float32) + bo_ref[...]
    feat_ref[...] = out                              # Feature_* export (pre-residual)
    o_ref[...] = _ln(tgt_ref[...] + out, g_ref[...], b_ref[...])   # residual + LayerNorm1


def _ffn_ln_kernel(x_ref, w1_ref, b1_ref, w2_ref, b2_ref, g_ref, b_ref, o_ref):
    x = x_ref[...]
    h = jnp.dot(x.astype(jnp.bfloat16), w1_ref[...],
                preferred_element_type=jnp.float32) + b1_ref[...]
    h = jnp.maximum(h, 0.0)
    y = jnp.dot(h.astype(jnp.bfloat16), w2_ref[...],
                preferred_element_type=jnp.float32) + b2_ref[...]
    o_ref[...] = _ln(x + y, g_ref[...], b_ref[...])  # residual + LayerNorm3


# ----------------------------- Pallas wrappers -----------------------------

def pallas_value_proj_all(src2, w_all, b_all):
    """All layers x both branches value projection in one call.
       src2 [2, R, D] f32, w_all [nl, 2, D, D] bf16, b_all [nl, 2, 1, D] -> [nl, 2, R, D] bf16."""
    nl = w_all.shape[0]
    _, R, D = src2.shape
    tile, Rp = _row_tiling(R)
    src2p = _pad_rows(src2, Rp)
    out = pl.pallas_call(
        _value_proj_kernel,
        out_shape=jax.ShapeDtypeStruct((nl, 2, Rp, D), jnp.bfloat16),
        grid=(nl, 2, Rp // tile),
        in_specs=[pl.BlockSpec((None, tile, D), lambda l, m, i: (m, i, 0)),
                  pl.BlockSpec((None, None, D, D), lambda l, m, i: (l, m, 0, 0)),
                  pl.BlockSpec((None, None, 1, D), lambda l, m, i: (l, m, 0, 0))],
        out_specs=pl.BlockSpec((None, None, tile, D), lambda l, m, i: (l, m, i, 0)),
        compiler_params=_mosaic_params(3),
    )(src2p, w_all, b_all)
    return out[:, :, :R, :]


def pallas_self_attn_block(sp, tgt2, qpos2, num_heads):
    """Fused QKV proj + per-head attention + out-proj + residual + LN2; grid (branch, batch)."""
    _, B, Q, D = tgt2.shape
    scale = 1.0 / math.sqrt(D // num_heads)
    x_spec = pl.BlockSpec((None, None, Q, D), lambda m, b: (m, b, 0, 0))
    return pl.pallas_call(
        functools.partial(_self_attn_kernel, num_heads=num_heads, scale=scale),
        out_shape=jax.ShapeDtypeStruct((2, B, Q, D), jnp.float32),
        grid=(2, B),
        in_specs=[x_spec, x_spec,
                  pl.BlockSpec((None, D, 3 * D), lambda m, b: (m, 0, 0)),
                  pl.BlockSpec((None, 1, 3 * D), lambda m, b: (m, 0, 0)),
                  pl.BlockSpec((None, D, D), lambda m, b: (m, 0, 0)),
                  pl.BlockSpec((None, 1, D), lambda m, b: (m, 0, 0)),
                  pl.BlockSpec((None, 1, D), lambda m, b: (m, 0, 0)),
                  pl.BlockSpec((None, 1, D), lambda m, b: (m, 0, 0))],
        out_specs=x_spec,
        compiler_params=_mosaic_params(2),
    )(tgt2, qpos2, sp["w_qkv"], sp["b_qkv"], sp["w_o"], sp["b_o"],
      sp["norm2_g"], sp["norm2_b"])


def pallas_samp_proj(cp, tgt2, qpos2, num_heads, n_lp):
    """Fused (sampling-offset | attention-weight) projection + per-head softmax, both branches."""
    _, B, Q, D = tgt2.shape
    M = B * Q
    off_dim = num_heads * n_lp * 2
    aw_dim = num_heads * n_lp
    N = off_dim + aw_dim
    tile, Mp = _row_tiling(M)
    t2 = _pad_rows(tgt2.reshape(2, M, D), Mp)
    p2 = _pad_rows(qpos2.reshape(2, M, D), Mp)
    y = pl.pallas_call(
        functools.partial(_samp_proj_kernel, num_heads=num_heads, n_lp=n_lp, off_dim=off_dim),
        out_shape=jax.ShapeDtypeStruct((2, Mp, N), jnp.float32),
        grid=(2, Mp // tile),
        in_specs=[pl.BlockSpec((None, tile, D), lambda m, i: (m, i, 0)),
                  pl.BlockSpec((None, tile, D), lambda m, i: (m, i, 0)),
                  pl.BlockSpec((None, D, N), lambda m, i: (m, 0, 0)),
                  pl.BlockSpec((None, 1, N), lambda m, i: (m, 0, 0))],
        out_specs=pl.BlockSpec((None, tile, N), lambda m, i: (m, i, 0)),
        compiler_params=_mosaic_params(2),
    )(t2, p2, cp["w_sa"], cp["b_sa"])
    y = y[:, :M, :]
    return y[..., :off_dim], y[..., off_dim:]


def pallas_deform_out(cp, vals2, tgt2):
    """Fused (L*P reduction + out-proj) matmul + residual + LN1 (+ Feature export)."""
    _, B, Q, D = tgt2.shape
    M = B * Q
    K = vals2.shape[-1]
    tile, Mp = _row_tiling(M)
    v2 = _pad_rows(vals2, Mp)
    t2 = _pad_rows(tgt2.reshape(2, M, D), Mp)
    feat, out = pl.pallas_call(
        _deform_out_kernel,
        out_shape=(jax.ShapeDtypeStruct((2, Mp, D), jnp.float32),
                   jax.ShapeDtypeStruct((2, Mp, D), jnp.float32)),
        grid=(2, Mp // tile),
        in_specs=[pl.BlockSpec((None, tile, K), lambda m, i: (m, i, 0)),
                  pl.BlockSpec((None, tile, D), lambda m, i: (m, i, 0)),
                  pl.BlockSpec((None, K, D), lambda m, i: (m, 0, 0)),
                  pl.BlockSpec((None, 1, D), lambda m, i: (m, 0, 0)),
                  pl.BlockSpec((None, 1, D), lambda m, i: (m, 0, 0)),
                  pl.BlockSpec((None, 1, D), lambda m, i: (m, 0, 0))],
        out_specs=(pl.BlockSpec((None, tile, D), lambda m, i: (m, i, 0)),
                   pl.BlockSpec((None, tile, D), lambda m, i: (m, i, 0))),
        compiler_params=_mosaic_params(2),
    )(v2, t2, cp["w_def"], cp["out_proj_b"], cp["norm1_g"], cp["norm1_b"])
    return (feat[:, :M, :].reshape(2, B, Q, D), out[:, :M, :].reshape(2, B, Q, D))


def pallas_ffn_block(lp, tgt2):
    """Fused FFN (w1+ReLU+w2) + residual + LayerNorm3, both branches."""
    _, B, Q, D = tgt2.shape
    M = B * Q
    F_ = lp["ffn_w1"].shape[-1]
    tile, Mp = _row_tiling(M)
    x2 = _pad_rows(tgt2.reshape(2, M, D), Mp)
    out = pl.pallas_call(
        _ffn_ln_kernel,
        out_shape=jax.ShapeDtypeStruct((2, Mp, D), jnp.float32),
        grid=(2, Mp // tile),
        in_specs=[pl.BlockSpec((None, tile, D), lambda m, i: (m, i, 0)),
                  pl.BlockSpec((None, D, F_), lambda m, i: (m, 0, 0)),
                  pl.BlockSpec((None, 1, F_), lambda m, i: (m, 0, 0)),
                  pl.BlockSpec((None, F_, D), lambda m, i: (m, 0, 0)),
                  pl.BlockSpec((None, 1, D), lambda m, i: (m, 0, 0)),
                  pl.BlockSpec((None, 1, D), lambda m, i: (m, 0, 0)),
                  pl.BlockSpec((None, 1, D), lambda m, i: (m, 0, 0))],
        out_specs=pl.BlockSpec((None, tile, D), lambda m, i: (m, i, 0)),
        compiler_params=_mosaic_params(2),
    )(x2, lp["ffn_w1"], lp["ffn_b1"], lp["ffn_w2"], lp["ffn_b2"],
      lp["norm3_g"], lp["norm3_b"])
    return out[:, :M, :].reshape(2, B, Q, D)


# ----------------------------- plain-JAX glue -----------------------------

def bilinear_sample(val_l, loc, Hl, Wl):
    """grid_sample(bilinear, align_corners=False, padding=zeros) equivalent.
    val_l: [B, H, Hl*Wl, Dh] (bf16), loc: [B, Q, H, P, 2] normalized (x, y) in [0, 1].
    returns [B, Q, H, P, Dh] f32."""
    # TODO(synk): data-dependent bilinear gather stays in plain JAX (needs manual DMA
    # gathers / one-hot-matmul formulation to move into Pallas); all surrounding
    # projections, softmax and aggregation are fused Pallas kernels.
    B, H, _, Dh = val_l.shape
    x = loc[..., 0] * Wl - 0.5
    y = loc[..., 1] * Hl - 0.5
    x0 = jnp.floor(x)
    y0 = jnp.floor(y)
    x1 = x0 + 1.0
    y1 = y0 + 1.0
    wx1 = x - x0
    wx0 = 1.0 - wx1
    wy1 = y - y0
    wy0 = 1.0 - wy1

    b_idx = jnp.arange(B)[:, None, None, None]
    h_idx = jnp.arange(H)[None, None, :, None]

    def gather(xi, yi):
        valid = (xi >= 0) & (xi <= Wl - 1) & (yi >= 0) & (yi <= Hl - 1)
        xi_c = jnp.clip(xi, 0, Wl - 1).astype(jnp.int32)
        yi_c = jnp.clip(yi, 0, Hl - 1).astype(jnp.int32)
        idx = yi_c * Wl + xi_c                      # [B, Q, H, P]
        v = val_l[b_idx, h_idx, idx]                # [B, Q, H, P, Dh]
        return v * valid[..., None].astype(v.dtype)

    v00 = gather(x0, y0)
    v01 = gather(x1, y0)
    v10 = gather(x0, y1)
    v11 = gather(x1, y1)
    return (v00 * (wx0 * wy0)[..., None] + v01 * (wx1 * wy0)[..., None]
            + v10 * (wx0 * wy1)[..., None] + v11 * (wx1 * wy1)[..., None])


def _branch_sampled_values(value, rp_in, offs, aw, spatial_shapes_list,
                           level_start_index, num_heads, num_points):
    """Per-branch deformable sampling (JAX glue). Returns attention-weighted flattened
    sampled values [B*Q, H*L*P*Dh] bf16."""
    B, S, D = value.shape
    Q = offs.shape[1]
    Dh = D // num_heads
    L = len(spatial_shapes_list)
    P = num_points

    offset_normalizer = jnp.array([[w, h] for (h, w) in spatial_shapes_list], jnp.float32)
    loc = (rp_in[:, :, None, :, None, :]
           + offs / offset_normalizer[None, None, None, :, None, :])   # [B,Q,H,L,P,2]

    sampled = []
    for l, (Hl, Wl) in enumerate(spatial_shapes_list):
        start = level_start_index[l]
        val_l = value[:, start:start + Hl * Wl].reshape(B, Hl * Wl, num_heads, Dh)
        val_l = val_l.transpose(0, 2, 1, 3)                            # [B, H, HW, Dh]
        sampled.append(bilinear_sample(val_l, loc[:, :, :, l], Hl, Wl))
    sampled = jnp.stack(sampled, axis=3)                               # [B, Q, H, L, P, Dh]
    weighted = sampled * aw[..., None]                                 # fold attention weights
    return weighted.reshape(B * Q, num_heads * L * P * Dh).astype(jnp.bfloat16)


def decoder_layer(lp, tgt2, qpos2, rp_in_RGB, rp_in_T, value_RGB, value_T,
                  ss_RGB, ss_T, lsi_RGB, lsi_T, num_heads, num_points):
    """One decoder layer for both branches. tgt2/qpos2: [2, B, Q, D] (0=RGB, 1=T)."""
    _, B, Q, D = tgt2.shape
    L = len(ss_RGB)
    n_lp = L * num_points

    # ---- self attention (q = k = tgt + pos, value = tgt) + residual + LN2
    tgt2 = pallas_self_attn_block(lp["self_attn"], tgt2, qpos2, num_heads)

    # ---- deformable cross attention
    ca = lp["cross_attn"]
    off2, aw2 = pallas_samp_proj(ca, tgt2, qpos2, num_heads, n_lp)     # [2,M,*]
    offs2 = off2.reshape(2, B, Q, num_heads, L, num_points, 2)
    aw2 = aw2.reshape(2, B, Q, num_heads, L, num_points)

    vals_rgb = _branch_sampled_values(value_RGB, rp_in_RGB, offs2[0], aw2[0],
                                      ss_RGB, lsi_RGB, num_heads, num_points)
    vals_t = _branch_sampled_values(value_T, rp_in_T, offs2[1], aw2[1],
                                    ss_T, lsi_T, num_heads, num_points)
    vals2 = jnp.stack([vals_rgb, vals_t], axis=0)                      # [2, M, H*L*P*Dh] bf16

    # TODO(synk): the dual-modality decoder-layer source was not provided; we export the
    # cross-attention output (pre-residual) as Feature_*.
    feat2, tgt2 = pallas_deform_out(ca, vals2, tgt2)

    # ---- FFN + residual + LN3
    tgt2 = pallas_ffn_block(lp, tgt2)
    return tgt2, feat2


def deformable_transformer_decoder(layers_params, tgt_RGB, tgt_T,
                                   reference_points_RGB, reference_points_T,
                                   src_RGB, src_T,
                                   src_spatial_shapes_RGB, src_spatial_shapes_T,
                                   src_level_start_index_RGB, src_level_start_index_T,
                                   src_valid_ratios_RGB, src_valid_ratios_T,
                                   query_pos_RGB=None, query_pos_T=None,
                                   src_padding_mask_RGB=None, src_padding_mask_T=None,
                                   *, num_heads, num_points, return_intermediate=False):
    assert reference_points_RGB.shape[-1] == 2
    assert tgt_RGB.shape == tgt_T.shape and src_RGB.shape == src_T.shape
    B, Q, D = tgt_RGB.shape
    S = src_RGB.shape[1]
    n_layers = len(layers_params)

    qpos_RGB = query_pos_RGB if query_pos_RGB is not None else jnp.zeros_like(tgt_RGB)
    qpos_T = query_pos_T if query_pos_T is not None else jnp.zeros_like(tgt_T)
    tgt2 = jnp.stack([tgt_RGB, tgt_T], axis=0)                         # [2, B, Q, D]
    qpos2 = jnp.stack([qpos_RGB, qpos_T], axis=0)

    # ---- all layers' value projections (depend only on src) in one up-front pallas_call
    src2 = jnp.stack([src_RGB.reshape(B * S, D), src_T.reshape(B * S, D)], axis=0)
    w_all = jnp.stack([lp["cross_attn"]["value_proj_w"] for lp in layers_params], axis=0)
    b_all = jnp.stack([lp["cross_attn"]["value_proj_b"] for lp in layers_params], axis=0)
    values_all = pallas_value_proj_all(src2, w_all, b_all)             # [nl, 2, B*S, D] bf16

    if src_padding_mask_RGB is not None or src_padding_mask_T is not None:
        m_rgb = (src_padding_mask_RGB if src_padding_mask_RGB is not None
                 else jnp.zeros((B, S), jnp.bool_))
        m_t = (src_padding_mask_T if src_padding_mask_T is not None
               else jnp.zeros((B, S), jnp.bool_))
        mask2 = jnp.stack([m_rgb.reshape(B * S), m_t.reshape(B * S)], axis=0)
        values_all = jnp.where(mask2[None, :, :, None], 0.0, values_all)

    intermediate_RGB, intermediate_T = [], []
    intermediate_rp_RGB, intermediate_rp_T = [], []
    Features_RGB, Features_T = [], []

    for lid, lp in enumerate(layers_params):
        rp_in_RGB = reference_points_RGB[:, :, None] * src_valid_ratios_RGB[:, None]
        rp_in_T = reference_points_T[:, :, None] * src_valid_ratios_T[:, None]

        value_RGB = values_all[lid, 0].reshape(B, S, D)
        value_T = values_all[lid, 1].reshape(B, S, D)

        tgt2, feat2 = decoder_layer(
            lp, tgt2, qpos2, rp_in_RGB, rp_in_T, value_RGB, value_T,
            src_spatial_shapes_RGB, src_spatial_shapes_T,
            src_level_start_index_RGB, src_level_start_index_T,
            num_heads, num_points)

        # bbox_embed is None in the reference module -> reference points unchanged.
        if return_intermediate:
            intermediate_RGB.append(tgt2[0])
            intermediate_T.append(tgt2[1])
            intermediate_rp_RGB.append(reference_points_RGB)
            intermediate_rp_T.append(reference_points_T)
        Features_RGB.append(feat2[0])
        Features_T.append(feat2[1])

    if return_intermediate:
        return (jnp.stack(intermediate_RGB), jnp.stack(intermediate_T),
                jnp.stack(intermediate_rp_RGB), jnp.stack(intermediate_rp_T),
                Features_RGB, Features_T)
    return (tgt2[0], tgt2[1], reference_points_RGB, reference_points_T,
            Features_RGB, Features_T)


# ----------------------------- parameter init / prep -----------------------------

def _init_linear(key, K, N):
    kw, kb = jax.random.split(key)
    w = jax.random.normal(kw, (K, N), jnp.float32) * (1.0 / math.sqrt(K))
    b = jax.random.normal(kb, (N,), jnp.float32) * 0.01
    return w, b


def init_branch_params(key, D, d_ffn, num_heads, num_levels, num_points):
    keys = jax.random.split(key, 12)
    wq, bq = _init_linear(keys[0], D, D)
    wk, bk = _init_linear(keys[1], D, D)
    wv, bv = _init_linear(keys[2], D, D)
    wo, bo = _init_linear(keys[3], D, D)
    vpw, vpb = _init_linear(keys[4], D, D)
    sow, sob = _init_linear(keys[5], D, num_heads * num_levels * num_points * 2)
    aww, awb = _init_linear(keys[6], D, num_heads * num_levels * num_points)
    opw, opb = _init_linear(keys[7], D, D)
    fw1, fb1 = _init_linear(keys[8], D, d_ffn)
    fw2, fb2 = _init_linear(keys[9], d_ffn, D)
    ones = jnp.ones((D,), jnp.float32)
    zeros = jnp.zeros((D,), jnp.float32)
    return {
        "self_attn": {"wq": wq, "bq": bq, "wk": wk, "bk": bk,
                      "wv": wv, "bv": bv, "wo": wo, "bo": bo},
        "cross_attn": {"value_proj_w": vpw, "value_proj_b": vpb,
                       "samp_off_w": sow, "samp_off_b": sob,
                       "attn_w_w": aww, "attn_w_b": awb,
                       "out_proj_w": opw, "out_proj_b": opb},
        "ffn_w1": fw1, "ffn_b1": fb1, "ffn_w2": fw2, "ffn_b2": fb2,
        "norm1_g": ones, "norm1_b": zeros,
        "norm2_g": ones, "norm2_b": zeros,
        "norm3_g": ones, "norm3_b": zeros,
    }


def prepare_layer_params(raw_rgb, raw_t, num_heads, num_levels, num_points):
    """Hoisted once per layer: fuse QKV / sampling projections, expand the deformable
    out-projection to the (h,l,p,d) sampled-value layout, cast weights to bf16, stack
    RGB & T along a leading branch axis (dim 0 of every leaf)."""
    D = raw_rgb["self_attn"]["wq"].shape[0]
    Dh = D // num_heads
    LP = num_levels * num_points
    bf = lambda w: w.astype(jnp.bfloat16)
    row = lambda b: b.reshape(1, -1).astype(jnp.float32)

    def branch(raw):
        sa, ca = raw["self_attn"], raw["cross_attn"]
        w_qkv = jnp.concatenate([sa["wq"], sa["wk"], sa["wv"]], axis=1)      # [D, 3D]
        b_qkv = jnp.concatenate([sa["bq"], sa["bk"], sa["bv"]])
        # W_def[(h,l,p,d), :] = Wo[h*Dh+d, :] — folds the L*P reduction into the out-proj matmul.
        w_def = jnp.broadcast_to(
            ca["out_proj_w"].reshape(num_heads, 1, Dh, D),
            (num_heads, LP, Dh, D)).reshape(num_heads * LP * Dh, D)
        return {
            "self_attn": {"w_qkv": bf(w_qkv), "b_qkv": row(b_qkv),
                          "w_o": bf(sa["wo"]), "b_o": row(sa["bo"]),
                          "norm2_g": row(raw["norm2_g"]), "norm2_b": row(raw["norm2_b"])},
            "cross_attn": {"value_proj_w": bf(ca["value_proj_w"]),
                           "value_proj_b": row(ca["value_proj_b"]),
                           "w_sa": bf(jnp.concatenate([ca["samp_off_w"], ca["attn_w_w"]], axis=1)),
                           "b_sa": row(jnp.concatenate([ca["samp_off_b"], ca["attn_w_b"]])),
                           "w_def": bf(w_def), "out_proj_b": row(ca["out_proj_b"]),
                           "norm1_g": row(raw["norm1_g"]), "norm1_b": row(raw["norm1_b"])},
            "ffn_w1": bf(raw["ffn_w1"]), "ffn_b1": row(raw["ffn_b1"]),
            "ffn_w2": bf(raw["ffn_w2"]), "ffn_b2": row(raw["ffn_b2"]),
            "norm3_g": row(raw["norm3_g"]), "norm3_b": row(raw["norm3_b"]),
        }

    prgb, pt = branch(raw_rgb), branch(raw_t)
    return jax.tree_util.tree_map(lambda a, b: jnp.stack([a, b], axis=0), prgb, pt)


# ----------------------------------- main -----------------------------------

if __name__ == "__main__":
    key = jax.random.PRNGKey(0)

    # small shapes consistent with the module's forward
    B, Q, D = 2, 16, 32          # batch, num queries, d_model
    num_heads, num_points = 4, 4
    num_layers = 2
    d_ffn = 64
    spatial_shapes = [(8, 8), (4, 4)]          # two feature levels (H_l, W_l)
    L = len(spatial_shapes)
    level_start_index = [0]
    for (h, w) in spatial_shapes[:-1]:
        level_start_index.append(level_start_index[-1] + h * w)
    S = sum(h * w for (h, w) in spatial_shapes)

    keys = jax.random.split(key, 16)
    layers_params = []
    for lid in range(num_layers):
        k_rgb, k_t = jax.random.split(keys[lid])
        layers_params.append(prepare_layer_params(
            init_branch_params(k_rgb, D, d_ffn, num_heads, L, num_points),
            init_branch_params(k_t, D, d_ffn, num_heads, L, num_points),
            num_heads, L, num_points))

    tgt_RGB = jax.random.normal(keys[4], (B, Q, D), jnp.float32)
    tgt_T = jax.random.normal(keys[5], (B, Q, D), jnp.float32)
    query_pos_RGB = jax.random.normal(keys[6], (B, Q, D), jnp.float32)
    query_pos_T = jax.random.normal(keys[7], (B, Q, D), jnp.float32)
    reference_points_RGB = jax.nn.sigmoid(jax.random.normal(keys[8], (B, Q, 2), jnp.float32))
    reference_points_T = jax.nn.sigmoid(jax.random.normal(keys[9], (B, Q, 2), jnp.float32))
    src_RGB = jax.random.normal(keys[10], (B, S, D), jnp.float32)
    src_T = jax.random.normal(keys[11], (B, S, D), jnp.float32)
    valid_ratios_RGB = jnp.full((B, L, 2), 0.9, jnp.float32)
    valid_ratios_T = jnp.full((B, L, 2), 0.95, jnp.float32)
    padding_mask_RGB = jnp.zeros((B, S), jnp.bool_)   # False = valid
    padding_mask_T = jnp.zeros((B, S), jnp.bool_)

    out = deformable_transformer_decoder(
        layers_params, tgt_RGB, tgt_T, reference_points_RGB, reference_points_T,
        src_RGB, src_T, spatial_shapes, spatial_shapes,
        level_start_index, level_start_index,
        valid_ratios_RGB, valid_ratios_T,
        query_pos_RGB, query_pos_T,
        padding_mask_RGB, padding_mask_T,
        num_heads=num_heads, num_points=num_points, return_intermediate=False)

    jax.block_until_ready(out)
    out_RGB, out_T, rp_RGB, rp_T, feats_RGB, feats_T = out
    assert out_RGB.shape == (B, Q, D) and out_T.shape == (B, Q, D)
    assert rp_RGB.shape == (B, Q, 2) and rp_T.shape == (B, Q, 2)
    assert len(feats_RGB) == num_layers and len(feats_T) == num_layers
    assert feats_RGB[0].shape == (B, Q, D) and feats_T[0].shape == (B, Q, D)
    assert bool(jnp.all(jnp.isfinite(out_RGB))) and bool(jnp.all(jnp.isfinite(out_T)))
    assert bool(jnp.all(jnp.isfinite(feats_RGB[-1]))) and bool(jnp.all(jnp.isfinite(feats_T[-1])))
    print("KERNEL_OK")
</pallas_src>

<mosaic_0001>
module attributes {stable_mosaic.version = 11 : i64} {
  func.func @_value_proj_kernel(%arg0: i32, %arg1: i32, %arg2: i32, %arg3: memref<1x160x32xf32, #tpu.memory_space<vmem>>, %arg4: memref<1x1x32x32xbf16, #tpu.memory_space<vmem>>, %arg5: memref<1x1x1x32xf32, #tpu.memory_space<vmem>>, %arg6: memref<1x1x160x32xbf16, #tpu.memory_space<vmem>>) attributes {dimension_semantics = [#tpu.dimension_semantics<parallel>, #tpu.dimension_semantics<parallel>, #tpu.dimension_semantics<parallel>], iteration_bounds = array<i64: 2, 2, 1>, scalar_prefetch = 0 : i64, scratch_operands = 0 : i64, tpu.core_type = #tpu.core_type<tc>, window_params = [{transform_indices = @transform_0, window_bounds = array<i64: 1, 160, 32>}, {transform_indices = @transform_1, window_bounds = array<i64: 1, 1, 32, 32>}, {transform_indices = @transform_2, window_bounds = array<i64: 1, 1, 1, 32>}, {transform_indices = @transform_3, window_bounds = array<i64: 1, 1, 160, 32>}]} {
    %c0 = arith.constant 0 : index
    %c0_0 = arith.constant 0 : index
    %c0_1 = arith.constant 0 : index
    %0 = vector.load %arg3[%c0, %c0_0, %c0_1] : memref<1x160x32xf32, #tpu.memory_space<vmem>>, vector<1x160x32xf32>
    %1 = vector.shape_cast %0 : vector<1x160x32xf32> to vector<160x32xf32>
    %2 = arith.truncf %1 : vector<160x32xf32> to vector<160x32xbf16>
    %c0_2 = arith.constant 0 : index
    %c0_3 = arith.constant 0 : index
    %c0_4 = arith.constant 0 : index
    %c0_5 = arith.constant 0 : index
    %3 = vector.load %arg4[%c0_2, %c0_3, %c0_4, %c0_5] : memref<1x1x32x32xbf16, #tpu.memory_space<vmem>>, vector<1x1x32x32xbf16>
    %4 = vector.shape_cast %3 : vector<1x1x32x32xbf16> to vector<32x32xbf16>
    %cst = arith.constant dense<0.000000e+00> : vector<160x32xf32>
    %5 = tpu.matmul %2, %4, %cst {dimension_numbers = #tpu.dot_dimension_numbers<[1], [0], [0], [1], [0, 0, 1, 1], [], []>} : vector<160x32xbf16>, vector<32x32xbf16>, vector<160x32xf32> -> vector<160x32xf32>
    %c0_6 = arith.constant 0 : index
    %c0_7 = arith.constant 0 : index
    %c0_8 = arith.constant 0 : index
    %c0_9 = arith.constant 0 : index
    %6 = vector.load %arg5[%c0_6, %c0_7, %c0_8, %c0_9] : memref<1x1x1x32xf32, #tpu.memory_space<vmem>>, vector<1x1x1x32xf32>
    %7 = vector.shape_cast %6 : vector<1x1x1x32xf32> to vector<1x32xf32>
    %8 = vector.broadcast %7 : vector<1x32xf32> to vector<160x32xf32>
    %9 = arith.addf %5, %8 : vector<160x32xf32>
    %10 = arith.truncf %9 : vector<160x32xf32> to vector<160x32xbf16>
    %c0_10 = arith.constant 0 : index
    %c0_11 = arith.constant 0 : index
    %c0_12 = arith.constant 0 : index
    %c0_13 = arith.constant 0 : index
    %11 = vector.load %arg6[%c0_10, %c0_11, %c0_12, %c0_13] : memref<1x1x160x32xbf16, #tpu.memory_space<vmem>>, vector<1x1x160x32xbf16>
    %12 = vector.shape_cast %11 : vector<1x1x160x32xbf16> to vector<160x32xbf16>
    %13 = vector.shape_cast %10 : vector<160x32xbf16> to vector<1x1x160x32xbf16>
    tpu.vector_store %arg6[%c0_10, %c0_11, %c0_12, %c0_13], %13 {strides = array<i32>} : memref<1x1x160x32xbf16, #tpu.memory_space<vmem>>, vector<1x1x160x32xbf16>,
    return
  }
  func.func @transform_0(%arg0: i32, %arg1: i32, %arg2: i32) -> (i32, i32, i32) {
    %c0_i32 = arith.constant 0 : i32
    %c0_i32_0 = arith.constant 0 : i32
    return %arg1, %arg2, %c0_i32 : i32, i32, i32
  }
  func.func @transform_1(%arg0: i32, %arg1: i32, %arg2: i32) -> (i32, i32, i32, i32) {
    %c0_i32 = arith.constant 0 : i32
    %c0_i32_0 = arith.constant 0 : i32
    %c0_i32_1 = arith.constant 0 : i32
    return %arg0, %arg1, %c0_i32, %c0_i32_0 : i32, i32, i32, i32
  }
  func.func @transform_2(%arg0: i32, %arg1: i32, %arg2: i32) -> (i32, i32, i32, i32) {
    %c0_i32 = arith.constant 0 : i32
    %c0_i32_0 = arith.constant 0 : i32
    %c0_i32_1 = arith.constant 0 : i32
    return %arg0, %arg1, %c0_i32, %c0_i32_0 : i32, i32, i32, i32
  }
  func.func @transform_3(%arg0: i32, %arg1: i32, %arg2: i32) -> (i32, i32, i32, i32) {
    %c0_i32 = arith.constant 0 : i32
    %c0_i32_0 = arith.constant 0 : i32
    return %arg0, %arg1, %arg2, %c0_i32 : i32, i32, i32, i32
  }
}

</mosaic_0001>

<llo_original>
// kernel: tpu_custom_call.1
$region0: #{tpu_custom_call.1}
  #allocation0 [shape = 'u32[]', space=smem, size = 0x4, offset = 0x4, fixed_abs, tag = 'smem constant byte address 0x4 - core index']
  #allocation1 [shape = 'u32[72,128]{1,0:T(1,128)}', space=vmem, size = 0x9000, scoped, tag = 'internal scratch']
  %s0 = inlined_call_operand.vmem [shape: f32[2,160,32], index: 0, kind: input, shape index: {}]
  %s1 = inlined_call_operand.vmem [shape: bf16[2,2,32,32], index: 1, kind: input, shape index: {}]
  %s2 = inlined_call_operand.vmem [shape: f32[2,2,1,32], index: 2, kind: input, shape index: {}]
  %s3 = inlined_call_operand.vmem [shape: bf16[2,2,160,32], index: 3, kind: output, shape index: {}]
  %s4 = sld [smem:[#allocation0]]
  $region45: #{tpu_custom_call.1} parent=0
    _
  %s6 = ssub.s32 1, %s4
  %s7 = scalar_select 0, %s6, %s4
  loop: start=0, step=1, limit=6
  $region2: #{tpu_custom_call.1} parent=0 // loop_pre_header
    _
  $region3: #{tpu_custom_call.1} parent=0 // loop_header
    %s9 = sphi 0, %s13
    %p10 = scmp.ge.s32.totalorder %s9, 6
    %s16 = sphi 0, %s35
    %s17 = sphi 0, %s31
    %s18 = sphi 0, %s27
    %s19 = sphi 0, %s16
    %s20 = sphi 0, %s17
    %s21 = sphi 0, %s18
    %s22 = sphi 0, %s19
    %s23 = sphi 0, %s20
    %s24 = sphi 0, %s21
    %s40 = sphi 0, %s42
    %s43 = sphi 0, %s40
    %s44 = sphi 0, %s43
    %s60 = sphi 0, %s44
    %s68 = sphi 0, %s70
    %s71 = sphi 0, %s68
    %s72 = sphi 0, %s71
    %s88 = sphi 0, %s72
    %s96 = sphi 0, %s98
    %s99 = sphi 0, %s96
    %s100 = sphi 0, %s99
    %s116 = sphi 0, %s100
    %s126 = sphi 0, %s128
    %s129 = sphi 0, %s126
    %s130 = sphi 0, %s129
    %s146 = sphi 0, %s130
  $region4: #{tpu_custom_call.1} parent=0 // loop_header_branch
    %12 = sbr.rel (%p10) target = $region8
  $region5: #{tpu_custom_call.1} parent=0 // loop_body
    %s14 = ssub.s32 %s9, 1
    %s15 = ssub.s32 %s9, 2
    %s25 = sadd.s32 1, %s18
    %p26 = scmp.ge.s32.totalorder %s25, 1
    %s27 = scalar_select %p26, 0, %s25
    %s28 = sadd.s32 1, %s17
    %s29 = scalar_select %p26, %s28, %s17
    %p30 = scmp.ge.s32.totalorder %s29, 2
    %s31 = scalar_select %p30, 0, %s29
    %s32 = sadd.s32 1, %s16
    %s33 = scalar_select %p30, %s32, %s16
    %p34 = scmp.ge.s32.totalorder %s33, 2
    %s35 = scalar_select %p34, 0, %s33
    %s36 = ssub.s32 %s17, %s31
    %s37 = ssub.s32 %s18, %s27
    %s38 = sor.u32 %s36, %s37
    %p39 = scmp.eq.s32.totalorder %s38, 0
    %s41 = sadd.s32 %s40, 1
    %s42 = scalar_select %p39, %s40, %s41
    %p45 = pneg %p39
    %p46 = scmp.eq.s32.totalorder %s9, 3
    %p47 = por %p45, %p46
    %p48 = scmp.ne.s32.totalorder %s40, %s43
    %p49 = scmp.eq.s32.totalorder %s9, 0
    %p50 = por %p48, %p49
    %p51 = scmp.ne.s32.totalorder %s40, %s43
    %p52 = scmp.eq.s32.totalorder %s14, 3
    %p53 = por %p51, %p52
    %p54 = scmp.ne.s32.totalorder %s43, %s44
    %p55 = scmp.eq.s32.totalorder %s14, 0
    %p56 = por %p54, %p55
    %p57 = scmp.ne.s32.totalorder %s43, %s44
    %p58 = scmp.eq.s32.totalorder %s15, 3
    %p59 = por %p57, %p58
    %p61 = scmp.ne.s32.totalorder %s44, %s60
    %p62 = scmp.eq.s32.totalorder %s15, 0
    %p63 = por %p61, %p62
    %s64 = ssub.s32 %s16, %s35
    %s65 = ssub.s32 %s17, %s31
    %s66 = sor.u32 %s64, %s65
    %p67 = scmp.eq.s32.totalorder %s66, 0
    %s69 = sadd.s32 %s68, 1
    %s70 = scalar_select %p67, %s68, %s69
    %p73 = pneg %p67
    %p74 = scmp.eq.s32.totalorder %s9, 3
    %p75 = por %p73, %p74
    %p76 = scmp.ne.s32.totalorder %s68, %s71
    %p77 = scmp.eq.s32.totalorder %s9, 0
    %p78 = por %p76, %p77
    %p79 = scmp.ne.s32.totalorder %s68, %s71
    %p80 = scmp.eq.s32.totalorder %s14, 3
    %p81 = por %p79, %p80
    %p82 = scmp.ne.s32.totalorder %s71, %s72
    %p83 = scmp.eq.s32.totalorder %s14, 0
    %p84 = por %p82, %p83
    %p85 = scmp.ne.s32.totalorder %s71, %s72
    %p86 = scmp.eq.s32.totalorder %s15, 3
    %p87 = por %p85, %p86
    %p89 = scmp.ne.s32.totalorder %s72, %s88
    %p90 = scmp.eq.s32.totalorder %s15, 0
    %p91 = por %p89, %p90
    %s92 = ssub.s32 %s16, %s35
    %s93 = ssub.s32 %s17, %s31
    %s94 = sor.u32 %s92, %s93
    %p95 = scmp.eq.s32.totalorder %s94, 0
    %s97 = sadd.s32 %s96, 1
    %s98 = scalar_select %p95, %s96, %s97
    %p101 = pneg %p95
    %p102 = scmp.eq.s32.totalorder %s9, 3
    %p103 = por %p101, %p102
    %p104 = scmp.ne.s32.totalorder %s96, %s99
    %p105 = scmp.eq.s32.totalorder %s9, 0
    %p106 = por %p104, %p105
    %p107 = scmp.ne.s32.totalorder %s96, %s99
    %p108 = scmp.eq.s32.totalorder %s14, 3
    %p109 = por %p107, %p108
    %p110 = scmp.ne.s32.totalorder %s99, %s100
    %p111 = scmp.eq.s32.totalorder %s14, 0
    %p112 = por %p110, %p111
    %p113 = scmp.ne.s32.totalorder %s99, %s100
    %p114 = scmp.eq.s32.totalorder %s15, 3
    %p115 = por %p113, %p114
    %p117 = scmp.ne.s32.totalorder %s100, %s116
    %p118 = scmp.eq.s32.totalorder %s15, 0
    %p119 = por %p117, %p118
    %s120 = ssub.s32 %s16, %s35
    %s121 = ssub.s32 %s17, %s31
    %s122 = sor.u32 %s120, %s121
    %s123 = ssub.s32 %s18, %s27
    %s124 = sor.u32 %s122, %s123
    %p125 = scmp.eq.s32.totalorder %s124, 0
    %s127 = sadd.s32 %s126, 1
    %s128 = scalar_select %p125, %s126, %s127
    %p131 = pneg %p125
    %p132 = scmp.eq.s32.totalorder %s9, 3
    %p133 = por %p131, %p132
    %p134 = scmp.ne.s32.totalorder %s126, %s129
    %p135 = scmp.eq.s32.totalorder %s9, 0
    %p136 = por %p134, %p135
    %p137 = scmp.ne.s32.totalorder %s126, %s129
    %p138 = scmp.eq.s32.totalorder %s14, 3
    %p139 = por %p137, %p138
    %p140 = scmp.ne.s32.totalorder %s129, %s130
    %p141 = scmp.eq.s32.totalorder %s14, 0
    %p142 = por %p140, %p141
    %p143 = scmp.ne.s32.totalorder %s129, %s130
    %p144 = scmp.eq.s32.totalorder %s15, 3
    %p145 = por %p143, %p144
    %p147 = scmp.ne.s32.totalorder %s130, %s146
    %p148 = scmp.eq.s32.totalorder %s15, 0
    %p149 = por %p147, %p148
    %p150 = scmp.le.s32.totalorder 1, %s9
    %p151 = scmp.lt.s32.totalorder %s9, 5
    %p152 = pnand %p150, %p151
    %p153 = pneg %p152
    // Predicated region
    $region9: #{tpu_custom_call.1} parent=5 // pred_check
      _
    $region10: #{tpu_custom_call.1} parent=5 // pred_check_branch
      %155 = sbr.rel (%p152) target = $region12
    $region11: #{tpu_custom_call.1} parent=5 // pred_region
      %s156 = ssub.s32 %s9, 1
    $region12: #{tpu_custom_call.1} parent=5 // pred_fallthru
      _
    %p157 = scmp.lt.s32.totalorder %s9, 4
    // Predicated region
    $region13: #{tpu_custom_call.1} parent=5 // pred_check
      %p158 = pneg %p157
    $region14: #{tpu_custom_call.1} parent=5 // pred_check_branch
      %160 = sbr.rel (%p158) target = $region16
    $region15: #{tpu_custom_call.1} parent=5 // pred_region
      // Predicated region
      $region17: #{tpu_custom_call.1} parent=15 // pred_check
        %p161 = pneg %p50
      $region18: #{tpu_custom_call.1} parent=15 // pred_check_branch
        %163 = sbr.rel (%p161) target = $region20
      $region19: #{tpu_custom_call.1} parent=15 // pred_region
        %s164 = smul.u32 20, %s18
        %p165 = scmp.lt.s32.totalorder %s17, 1
        %s166 = scalar_select %p165, %s17, 1
        %p167 = scmp.lt.s32.totalorder %s164, 19
        %s168 = scalar_select %p167, %s164, 19
        %s169 = smul.addr %s166, 20
        %s170 = sadd.s32 %s168, %s169
        %s171 = smul.addr %s170, 8
        %s172 = scalar_lea.vmem %s0, %s171
        %s173 = smul.u32 20, %s18
      $region20: #{tpu_custom_call.1} parent=15 // pred_fallthru
        _
      // Predicated region
      $region21: #{tpu_custom_call.1} parent=15 // pred_check
        %p174 = pneg %p78
      $region22: #{tpu_custom_call.1} parent=15 // pred_check_branch
        %176 = sbr.rel (%p174) target = $region24
      $region23: #{tpu_custom_call.1} parent=15 // pred_region
        %p177 = scmp.lt.s32.totalorder %s16, 1
        %s178 = scalar_select %p177, %s16, 1
        %p179 = scmp.lt.s32.totalorder %s17, 1
        %s180 = scalar_select %p179, %s17, 1
        %s181 = smul.addr %s180, 4
        %s182 = smul.addr %s178, 8
        %s183 = sadd.s32 %s181, %s182
        %s184 = smul.addr %s183, 4
        %s185 = scalar_lea.vmem %s1, %s184
      $region24: #{tpu_custom_call.1} parent=15 // pred_fallthru
        _
      // Predicated region
      $region25: #{tpu_custom_call.1} parent=15 // pred_check
        %p186 = pneg %p106
      $region26: #{tpu_custom_call.1} parent=15 // pred_check_branch
        %188 = sbr.rel (%p186) target = $region28
      $region27: #{tpu_custom_call.1} parent=15 // pred_region
        %p189 = scmp.lt.s32.totalorder %s16, 1
        %s190 = scalar_select %p189, %s16, 1
        %p191 = scmp.lt.s32.totalorder %s17, 1
        %s192 = scalar_select %p191, %s17, 1
        %s193 = smul.addr %s190, 2
        %s194 = sadd.s32 %s192, %s193
        %s195 = scalar_lea.vmem %s2, %s194
      $region28: #{tpu_custom_call.1} parent=15 // pred_fallthru
        _
    $region16: #{tpu_custom_call.1} parent=5 // pred_fallthru
      _
    %p196 = scmp.le.s32.totalorder 1, %s9
    %p197 = scmp.lt.s32.totalorder %s9, 5
    %p198 = pnand %p196, %p197
    %p199 = pneg %p198
    // Predicated region
    $region29: #{tpu_custom_call.1} parent=5 // pred_check
      _
    $region30: #{tpu_custom_call.1} parent=5 // pred_check_branch
      %201 = sbr.rel (%p198) target = $region32
    $region31: #{tpu_custom_call.1} parent=5 // pred_region
      %s202 = ssub.s32 %s9, 1
      %s203 = smul.u32 20, %s21
      %p204 = scmp.lt.s32.totalorder %s20, 1
      %s205 = scalar_select %p204, %s20, 1
      %p206 = scmp.lt.s32.totalorder %s203, 19
      %s207 = scalar_select %p206, %s203, 19
      %s208 = smul.addr %s205, 20
      %s209 = sadd.s32 %s207, %s208
      %s210 = smul.addr %s209, 8
      %s211 = scalar_lea.vmem %s0, %s210
      %p212 = pneg %p56
      %p213 = pneg %p53
      %p214 = scmp.lt.s32.totalorder %s19, 1
      %s215 = scalar_select %p214, %s19, 1
      %p216 = scmp.lt.s32.totalorder %s20, 1
      %s217 = scalar_select %p216, %s20, 1
      %s218 = smul.addr %s217, 4
      %s219 = smul.addr %s215, 8
      %s220 = sadd.s32 %s218, %s219
      %s221 = smul.addr %s220, 4
      %s222 = scalar_lea.vmem %s1, %s221
      %p223 = pneg %p84
      %p224 = pneg %p81
      %p225 = scmp.lt.s32.totalorder %s19, 1
      %s226 = scalar_select %p225, %s19, 1
      %p227 = scmp.lt.s32.totalorder %s20, 1
      %s228 = scalar_select %p227, %s20, 1
      %s229 = smul.addr %s226, 2
      %s230 = sadd.s32 %s228, %s229
      %s231 = scalar_lea.vmem %s2, %s230
      %p232 = pneg %p112
      %p233 = pneg %p109
      %p234 = pneg %p142
      %p235 = pneg %p139
      %s236 = smul.u32 20, %s21
      %p237 = scmp.lt.s32.totalorder %s19, 1
      %s238 = scalar_select %p237, %s19, 1
      %p239 = scmp.lt.s32.totalorder %s20, 1
      %s240 = scalar_select %p239, %s20, 1
      %p241 = scmp.lt.s32.totalorder %s236, 19
      %s242 = scalar_select %p241, %s236, 19
      %s243 = smul.addr %s240, 20
      %s244 = sadd.s32 %s242, %s243
      %s245 = smul.addr %s238, 40
      %s246 = sadd.s32 %s244, %s245
      %s247 = smul.addr %s246, 4
      %s248 = scalar_lea.vmem %s3, %s247
      %s249 = smul.u32 20, %s21
      %p250 = scmp.lt.s32.totalorder %s20, 1
      %s251 = scalar_select %p250, %s20, 1
      %p252 = scmp.lt.s32.totalorder %s249, 19
      %s253 = scalar_select %p252, %s249, 19
      %s254 = smul.addr %s251, 20
      %s255 = sadd.s32 %s253, %s254
      %s256 = smul.addr %s255, 8
      %s257 = scalar_lea.vmem %s0, %s256
      %s258 = smul.u32 20, %s21
      %p259 = scmp.lt.s32.totalorder %s19, 1
      %s260 = scalar_select %p259, %s19, 1
      %p261 = scmp.lt.s32.totalorder %s20, 1
      %s262 = scalar_select %p261, %s20, 1
      %s263 = smul.addr %s262, 4
      %s264 = smul.addr %s260, 8
      %s265 = sadd.s32 %s263, %s264
      %s266 = smul.addr %s265, 4
      %s267 = scalar_lea.vmem %s1, %s266
      %p268 = scmp.lt.s32.totalorder %s19, 1
      %s269 = scalar_select %p268, %s19, 1
      %p270 = scmp.lt.s32.totalorder %s20, 1
      %s271 = scalar_select %p270, %s20, 1
      %s272 = smul.addr %s269, 2
      %s273 = sadd.s32 %s271, %s272
      %s274 = scalar_lea.vmem %s2, %s273
      %s275 = smul.u32 20, %s21
      %p276 = scmp.lt.s32.totalorder %s19, 1
      %s277 = scalar_select %p276, %s19, 1
      %p278 = scmp.lt.s32.totalorder %s20, 1
      %s279 = scalar_select %p278, %s20, 1
      %p280 = scmp.lt.s32.totalorder %s275, 19
      %s281 = scalar_select %p280, %s275, 19
      %s282 = smul.addr %s279, 20
      %s283 = sadd.s32 %s281, %s282
      %s284 = smul.addr %s277, 40
      %s285 = sadd.s32 %s283, %s284
      %s286 = smul.addr %s285, 4
      %s287 = scalar_lea.vmem %s3, %s286
      %s288 = smul.u32 20, %s21
      %v290 = vld [vmem:[%s257] sm:$0xff]
      %v291 = vld [vmem:[%s257 + $0x8] sm:$0xff]
      %v292 = vld [vmem:[%s257 + $0x10] sm:$0xff]
      %v293 = vld [vmem:[%s257 + $0x18] sm:$0xff]
      %v294 = vld [vmem:[%s257 + $0x20] sm:$0xff]
      %v295 = vld [vmem:[%s257 + $0x28] sm:$0xff]
      %v296 = vld [vmem:[%s257 + $0x30] sm:$0xff]
      %v297 = vld [vmem:[%s257 + $0x38] sm:$0xff]
      %v298 = vld [vmem:[%s257 + $0x40] sm:$0xff]
      %v299 = vld [vmem:[%s257 + $0x48] sm:$0xff]
      %v300 = vld [vmem:[%s257 + $0x50] sm:$0xff]
      %v301 = vld [vmem:[%s257 + $0x58] sm:$0xff]
      %v302 = vld [vmem:[%s257 + $0x60] sm:$0xff]
      %v303 = vld [vmem:[%s257 + $0x68] sm:$0xff]
      %v304 = vld [vmem:[%s257 + $0x70] sm:$0xff]
      %v305 = vld [vmem:[%s257 + $0x78] sm:$0xff]
      %v306 = vld [vmem:[%s257 + $0x80] sm:$0xff]
      %v307 = vld [vmem:[%s257 + $0x88] sm:$0xff]
      %v308 = vld [vmem:[%s257 + $0x90] sm:$0xff]
      %v309 = vld [vmem:[%s257 + $0x98] sm:$0xff]
      %v310 = vpack.c.bf16 %v291, %v290
      %v311 = vpack.c.bf16 %v293, %v292
      %v312 = vpack.c.bf16 %v295, %v294
      %v313 = vpack.c.bf16 %v297, %v296
      %v314 = vpack.c.bf16 %v299, %v298
      %v315 = vpack.c.bf16 %v301, %v300
      %v316 = vpack.c.bf16 %v303, %v302
      %v317 = vpack.c.bf16 %v305, %v304
      %v318 = vpack.c.bf16 %v307, %v306
      %v319 = vpack.c.bf16 %v309, %v308
      %v320 = vld [vmem:[%s267] sm:$0xf]
      %v321 = vld [vmem:[%s267 + $0x4] sm:$0xf]
      %v322 = vld [vmem:[%s267 + $0x8] sm:$0xf]
      %v323 = vld [vmem:[%s267 + $0xc] sm:$0xf]
      %v324 = vld [vmem:[%s274] sm:$0x1]
      %v326 = vperm.slane %v324, 0
      %v332 = vunpack.c.l.b16 %v320
      %v333 = vunpack.c.l.b16 %v321
      %v334 = vunpack.c.l.b16 %v322
      %v335 = vunpack.c.l.b16 %v323
      %v336 = vpack.c.b16 %v333, %v332
      %v337 = vpack.c.b16 %v335, %v334
      %vm340 = vcmask 261120
      %v342 = vsel %vm340, %v310, 0
      %v345 = vsel %vm340, %v311, 0
      %v348 = vsel %vm340, %v312, 0
      %v351 = vsel %vm340, %v313, 0
      %v354 = vsel %vm340, %v314, 0
      %v357 = vsel %vm340, %v315, 0
      %v360 = vsel %vm340, %v316, 0
      %v363 = vsel %vm340, %v317, 0
      %v366 = vsel %vm340, %v318, 0
      %v369 = vsel %vm340, %v319, 0
      %371 = vmatpush.bf16.msra.mxu0 0
      %372 = vmatpush.bf16.msra.mxu0 0
      %373 = vmatpush.bf16.msra.mxu0 0
      %374 = vmatpush.bf16.msra.mxu0 0
      %375 = vmatpush.bf16.msra.mxu0 0
      %376 = vmatpush.bf16.msra.mxu0 0
      %377 = vmatpush.bf16.msra.mxu0 %v337
      %378 = vmatpush.bf16.msra.mxu0 %v336
      %379 = vmatmul.bf16.gmra.mxu0 %v342
      %v380 = vpop.f32.mrf.mxu0
      %v381 = vadd.f32 %v326, %v380
      %v382 = vpop.f32.mrf.mxu0
      %v383 = vadd.f32 %v326, %v382
      %384 = vmatmul.bf16.gmra.mxu0 %v345
      %v385 = vpop.f32.mrf.mxu0
      %v386 = vadd.f32 %v326, %v385
      %v387 = vpop.f32.mrf.mxu0
      %v388 = vadd.f32 %v326, %v387
      %389 = vmatmul.bf16.gmra.mxu0 %v348
      %v390 = vpop.f32.mrf.mxu0
      %v391 = vadd.f32 %v326, %v390
      %v392 = vpop.f32.mrf.mxu0
      %v393 = vadd.f32 %v326, %v392
      %394 = vmatmul.bf16.gmra.mxu0 %v351
      %v395 = vpop.f32.mrf.mxu0
      %v396 = vadd.f32 %v326, %v395
      %v397 = vpop.f32.mrf.mxu0
      %v398 = vadd.f32 %v326, %v397
      %399 = vmatmul.bf16.gmra.mxu0 %v354
      %v400 = vpop.f32.mrf.mxu0
      %v401 = vadd.f32 %v326, %v400
      %v402 = vpop.f32.mrf.mxu0
      %v403 = vadd.f32 %v326, %v402
      %404 = vmatmul.bf16.gmra.mxu0 %v357
      %v405 = vpop.f32.mrf.mxu0
      %v406 = vadd.f32 %v326, %v405
      %v407 = vpop.f32.mrf.mxu0
      %v408 = vadd.f32 %v326, %v407
      %409 = vmatmul.bf16.gmra.mxu0 %v360
      %v410 = vpop.f32.mrf.mxu0
      %v411 = vadd.f32 %v326, %v410
      %v412 = vpop.f32.mrf.mxu0
      %v413 = vadd.f32 %v326, %v412
      %414 = vmatmul.bf16.gmra.mxu0 %v363
      %v415 = vpop.f32.mrf.mxu0
      %v416 = vadd.f32 %v326, %v415
      %v417 = vpop.f32.mrf.mxu0
      %v418 = vadd.f32 %v326, %v417
      %419 = vmatmul.bf16.gmra.mxu0 %v366
      %v420 = vpop.f32.mrf.mxu0
      %v421 = vadd.f32 %v326, %v420
      %v422 = vpop.f32.mrf.mxu0
      %v423 = vadd.f32 %v326, %v422
      %424 = vmatmul.bf16.gmra.mxu0 %v369
      %v425 = vpop.f32.mrf.mxu0
      %v426 = vadd.f32 %v326, %v425
      %v427 = vpop.f32.mrf.mxu0
      %v428 = vadd.f32 %v326, %v427
      %429 = vdwg.mxu0
      %v430 = vpack.c.bf16 %v381, %v381
      %v431 = vpack.c.bf16 %v383, %v383
      %v432 = vpack.c.bf16 %v386, %v386
      %v433 = vpack.c.bf16 %v388, %v388
      %v434 = vpack.c.bf16 %v391, %v391
      %v435 = vpack.c.bf16 %v393, %v393
      %v436 = vpack.c.bf16 %v396, %v396
      %v437 = vpack.c.bf16 %v398, %v398
      %v438 = vpack.c.bf16 %v401, %v401
      %v439 = vpack.c.bf16 %v403, %v403
      %v440 = vpack.c.bf16 %v406, %v406
      %v441 = vpack.c.bf16 %v408, %v408
      %v442 = vpack.c.bf16 %v411, %v411
      %v443 = vpack.c.bf16 %v413, %v413
      %v444 = vpack.c.bf16 %v416, %v416
      %v445 = vpack.c.bf16 %v418, %v418
      %v446 = vpack.c.bf16 %v421, %v421
      %v447 = vpack.c.bf16 %v423, %v423
      %v448 = vpack.c.bf16 %v426, %v426
      %v449 = vpack.c.bf16 %v428, %v428
      %vm450 = vcmask 257024
      %451 = vst.msk [vmem:[%s287] sm:$0xf] %vm450, %v430
      %452 = vst.msk [vmem:[%s287 + $0x4] sm:$0xf] %vm450, %v431
      %453 = vst.msk [vmem:[%s287 + $0x8] sm:$0xf] %vm450, %v432
      %454 = vst.msk [vmem:[%s287 + $0xc] sm:$0xf] %vm450, %v433
      %455 = vst.msk [vmem:[%s287 + $0x10] sm:$0xf] %vm450, %v434
      %456 = vst.msk [vmem:[%s287 + $0x14] sm:$0xf] %vm450, %v435
      %457 = vst.msk [vmem:[%s287 + $0x18] sm:$0xf] %vm450, %v436
      %458 = vst.msk [vmem:[%s287 + $0x1c] sm:$0xf] %vm450, %v437
      %459 = vst.msk [vmem:[%s287 + $0x20] sm:$0xf] %vm450, %v438
      %460 = vst.msk [vmem:[%s287 + $0x24] sm:$0xf] %vm450, %v439
      %461 = vst.msk [vmem:[%s287 + $0x28] sm:$0xf] %vm450, %v440
      %462 = vst.msk [vmem:[%s287 + $0x2c] sm:$0xf] %vm450, %v441
      %463 = vst.msk [vmem:[%s287 + $0x30] sm:$0xf] %vm450, %v442
      %464 = vst.msk [vmem:[%s287 + $0x34] sm:$0xf] %vm450, %v443
      %465 = vst.msk [vmem:[%s287 + $0x38] sm:$0xf] %vm450, %v444
      %466 = vst.msk [vmem:[%s287 + $0x3c] sm:$0xf] %vm450, %v445
      %467 = vst.msk [vmem:[%s287 + $0x40] sm:$0xf] %vm450, %v446
      %468 = vst.msk [vmem:[%s287 + $0x44] sm:$0xf] %vm450, %v447
      %469 = vst.msk [vmem:[%s287 + $0x48] sm:$0xf] %vm450, %v448
      %470 = vst.msk [vmem:[%s287 + $0x4c] sm:$0xf] %vm450, %v449
      %s471 = smul.u32 20, %s21
      %p472 = scmp.lt.s32.totalorder %s19, 1
      %s473 = scalar_select %p472, %s19, 1
      %p474 = scmp.lt.s32.totalorder %s20, 1
      %s475 = scalar_select %p474, %s20, 1
      %p476 = scmp.lt.s32.totalorder %s471, 19
      %s477 = scalar_select %p476, %s471, 19
      %s478 = smul.addr %s475, 20
      %s479 = sadd.s32 %s477, %s478
      %s480 = smul.addr %s473, 40
      %s481 = sadd.s32 %s479, %s480
      %s482 = smul.addr %s481, 4
      %s483 = scalar_lea.vmem %s3, %s482
      // Predicated region
      $region33: #{tpu_custom_call.1} parent=31 // pred_check
        %p484 = pneg %p139
      $region34: #{tpu_custom_call.1} parent=31 // pred_check_branch
        %486 = sbr.rel (%p484) target = $region36
      $region35: #{tpu_custom_call.1} parent=31 // pred_region
        %s487 = smul.u32 20, %s21
      $region36: #{tpu_custom_call.1} parent=31 // pred_fallthru
        _
    $region32: #{tpu_custom_call.1} parent=5 // pred_fallthru
      _
    %p488 = scmp.le.s32.totalorder 2, %s9
    // Predicated region
    $region37: #{tpu_custom_call.1} parent=5 // pred_check
      %p489 = pneg %p488
    $region38: #{tpu_custom_call.1} parent=5 // pred_check_branch
      %491 = sbr.rel (%p489) target = $region40
    $region39: #{tpu_custom_call.1} parent=5 // pred_region
      %s492 = ssub.s32 %s9, 2
      // Predicated region
      $region41: #{tpu_custom_call.1} parent=39 // pred_check
        %p493 = pneg %p145
      $region42: #{tpu_custom_call.1} parent=39 // pred_check_branch
        %495 = sbr.rel (%p493) target = $region44
      $region43: #{tpu_custom_call.1} parent=39 // pred_region
        %s496 = smul.u32 20, %s24
        %p497 = scmp.lt.s32.totalorder %s22, 1
        %s498 = scalar_select %p497, %s22, 1
        %p499 = scmp.lt.s32.totalorder %s23, 1
        %s500 = scalar_select %p499, %s23, 1
        %p501 = scmp.lt.s32.totalorder %s496, 19
        %s502 = scalar_select %p501, %s496, 19
        %s503 = smul.addr %s500, 20
        %s504 = sadd.s32 %s502, %s503
        %s505 = smul.addr %s498, 40
        %s506 = sadd.s32 %s504, %s505
        %s507 = smul.addr %s506, 4
        %s508 = scalar_lea.vmem %s3, %s507
      $region44: #{tpu_custom_call.1} parent=39 // pred_fallthru
        _
    $region40: #{tpu_custom_call.1} parent=5 // pred_fallthru
      _
  $region6: #{tpu_custom_call.1} parent=0 // loop_footer
    %s13 = sadd.s32 1, %s9
  $region7: #{tpu_custom_call.1} parent=0 // loop_footer_branch
    %8 = sbr.rel target = $region3
  $region8: #{tpu_custom_call.1} parent=0 // loop_exit
    _

</llo_original>
